<compile_context>
chip_gen: v6e
topology: v6e:2x2x1
jax: 0.10.0
libtpu: 0.0.40
codegen_flags: <defaults>
</compile_context>

<pallas_src>
import math

import numpy as np

import jax
import jax.numpy as jnp
from jax.experimental import pallas as pl
from jax.experimental.pallas import tpu as pltpu

_LANE = 128
_TARGET_BLOCK_BYTES = 4 << 20  # ~4 MiB blocks; resident ~4x with in/out double buffering


def build_positional_encoding(max_len=1000, emb_size=12, dtype=jnp.float32):
    """Deterministic buffer identical to the PyTorch __init__ (requires even emb_size)."""
    assert emb_size % 2 == 0, "PositionalEncoding requires an even emb_size (as in the original)"
    position = jnp.arange(0, max_len, dtype=jnp.float32)[:, None]                # (max_len, 1)
    div_term = jnp.exp(
        jnp.arange(0, emb_size, 2, dtype=jnp.float32) * (-math.log(10000.0) / emb_size)
    )                                                                            # (emb/2,)
    angles = position * div_term                                                 # (max_len, emb/2)
    pe = jnp.zeros((max_len, emb_size), dtype=jnp.float32)
    pe = pe.at[:, 0::2].set(jnp.sin(angles))
    pe = pe.at[:, 1::2].set(jnp.cos(angles))
    return pe[:, None, :].astype(dtype)                                          # (max_len, 1, emb)


def _pe_add_kernel(x_ref, tab_ref, o_ref):
    # x_ref/o_ref: (tile_r, L) slab tile.  tab_ref: (2, L) -> row 0 = w_row, row 1 = phase.
    tile_r, lane_w = x_ref.shape
    rows = jax.lax.broadcasted_iota(jnp.int32, (tile_r, lane_w), 0)
    rows = rows + pl.program_id(0) * tile_r
    # angle = row * (s_per_row * w) + (soff * w + is_cos * pi/2)   -> one FMA + one sin
    angle = rows.astype(jnp.float32) * tab_ref[0:1, :] + tab_ref[1:2, :]
    pe = jnp.sin(angle)
    o_ref[...] = (x_ref[...].astype(jnp.float32) + pe).astype(o_ref.dtype)


def _round_up(v, m):
    return (v + m - 1) // m * m


def _sublane_quantum(itemsize):
    if itemsize >= 4:
        return 8
    if itemsize == 2:
        return 16     # bf16 packs (16, 128) per vreg
    return 32


def _choose_tile_rows(n_rows, lane_w, itemsize):
    q = _sublane_quantum(itemsize)
    if n_rows <= q:
        return n_rows
    row_bytes = _round_up(lane_w, _LANE) * itemsize       # VMEM footprint uses padded lanes
    tr = max(q, (_TARGET_BLOCK_BYTES // row_bytes) // q * q)
    # Keep the grid at >=4 (or >=2) blocks when row count permits: v7x has 2 TensorCores
    # sharded over the "parallel" axis, and >=2 steps lets the double-buffer pipeline.
    if n_rows >= 4 * q:
        tr = min(tr, max(q, (n_rows // 4) // q * q))
    elif n_rows >= 2 * q:
        tr = min(tr, max(q, (n_rows // 2) // q * q))
    return min(tr, n_rows)


def _positional_encoding_pallas(x):
    S, B, E = x.shape
    assert E % 2 == 0
    BE = B * E
    N = S * BE
    itemsize = x.dtype.itemsize

    # Layout choice (never copies):
    #   * flat (N/L, L) with L = lcm(BE, 128) when L divides N -> fully lane-dense.
    #   * otherwise natural (S, BE): last block dim == full dim (always legal), no padding.
    L_dense = math.lcm(BE, _LANE)
    if L_dense <= 32768 and N % L_dense == 0:
        L = L_dense
    else:
        L = BE
    R = N // L
    x2d = x.reshape(R, L)

    # Host-side (float64) per-lane tables, fused into one (2, L) array.
    div_term = np.exp(np.arange(0, E, 2, dtype=np.float64) * (-math.log(10000.0) / E))  # (E/2,)
    w_per_e = np.repeat(div_term, 2)                                   # (E,) frequency per column
    is_cos = (np.arange(E) % 2).astype(np.float64)                     # (E,) 1.0 for cos columns
    col = np.arange(L)
    e = col % E
    soff = (col // BE).astype(np.float64)                              # in-row position offset
    w_col = w_per_e[e]
    s_per_row = L // BE                                                # positions per flat row
    w_row = w_col * float(s_per_row)
    phase = is_cos[e] * (math.pi / 2.0) + soff * w_col
    tab = jnp.asarray(np.stack([w_row, phase]).astype(np.float32))     # (2, L)

    tile_r = _choose_tile_rows(R, L, itemsize)
    grid = (pl.cdiv(R, tile_r),)

    tile_vmem = tile_r * _round_up(L, _LANE) * itemsize
    # in + out, each double-buffered, + table tiles + headroom; clamp to safe range.
    vmem_limit = int(min(max(4 * tile_vmem + (2 << 20), 16 << 20), 64 << 20))

    out2d = pl.pallas_call(
        _pe_add_kernel,
        out_shape=jax.ShapeDtypeStruct((R, L), x.dtype),
        grid_spec=pltpu.PrefetchScalarGridSpec(
            num_scalar_prefetch=0,
            grid=grid,
            in_specs=[
                pl.BlockSpec((tile_r, L), lambda i: (i, 0)),
                pl.BlockSpec((2, L), lambda i: (0, 0)),
            ],
            out_specs=pl.BlockSpec((tile_r, L), lambda i: (i, 0)),
        ),
        compiler_params=pltpu.CompilerParams(
            dimension_semantics=("parallel",),
            vmem_limit_bytes=vmem_limit,
        ),
        cost_estimate=pl.CostEstimate(
            flops=5 * N,
            transcendentals=N,                       # single sin per element (phase fold)
            bytes_accessed=2 * N * itemsize + 2 * L * 4,
        ),
    )(x2d, tab)

    return out2d.reshape(S, B, E)


def positional_encoding_forward(x, pe, *, force_pallas=False, min_pallas_elements=1 << 20):
    """Forward of the PyTorch module: x + pe[:x.shape[0]].  x: (S, B, E), pe: (max_len, 1, E)."""
    S, _, E = x.shape
    assert pe.shape[0] >= S and pe.shape[-1] == E
    if (not force_pallas) and x.size < min_pallas_elements:
        # Tiny inputs: a fused XLA elementwise add beats any Pallas dispatch.
        return x + pe[:S]
    return _positional_encoding_pallas(x)


if __name__ == "__main__":
    max_len, emb_size = 1000, 12
    seq, batch = 8, 2

    pe = build_positional_encoding(max_len=max_len, emb_size=emb_size)
    x = jax.random.normal(jax.random.PRNGKey(0), (seq, batch, emb_size), dtype=jnp.float32)

    # Exercise the Pallas kernel on the module's small demo shape (natural-layout path).
    out = positional_encoding_forward(x, pe, force_pallas=True)
    out = jax.block_until_ready(out)
    ref = x + pe[:seq]
    assert out.shape == (seq, batch, emb_size)
    assert jnp.allclose(out, ref, atol=1e-5, rtol=1e-5), "mismatch vs reference (small)"

    # Also exercise the lane-dense, multi-block pipelined path on a larger shape.
    seq_b, batch_b = 1024, 16
    pe_b = build_positional_encoding(max_len=2048, emb_size=emb_size)
    x_b = jax.random.normal(jax.random.PRNGKey(1), (seq_b, batch_b, emb_size), jnp.float32)
    out_b = jax.block_until_ready(positional_encoding_forward(x_b, pe_b, force_pallas=True))
    ref_b = x_b + pe_b[:seq_b]
    assert jnp.allclose(out_b, ref_b, atol=2e-3, rtol=1e-5), "mismatch vs reference (large)"

    print("KERNEL_OK")
</pallas_src>

<mosaic_0001>
module attributes {stable_mosaic.version = 11 : i64} {
  func.func @_pe_add_kernel(%arg0: i32, %arg1: memref<8x24xf32, #tpu.memory_space<vmem>>, %arg2: memref<2x24xf32, #tpu.memory_space<vmem>>, %arg3: memref<8x24xf32, #tpu.memory_space<vmem>>) attributes {dimension_semantics = [#tpu.dimension_semantics<parallel>], iteration_bounds = array<i64: 1>, scalar_prefetch = 0 : i64, scratch_operands = 0 : i64, tpu.core_type = #tpu.core_type<tc>, window_params = [{transform_indices = @transform_0, window_bounds = array<i64: 8, 24>}, {pipeline_mode = #tpu.pipeline_mode<synchronous>, transform_indices = @transform_1, window_bounds = array<i64: 2, 24>}, {transform_indices = @transform_2, window_bounds = array<i64: 8, 24>}]} {
    %0 = tpu.iota {dimensions = array<i32: 0>} : vector<8x24xi32>
    %c8_i32 = arith.constant 8 : i32
    %1 = arith.muli %arg0, %c8_i32 : i32
    %2 = vector.broadcast %1 : i32 to vector<8x24xi32>
    %3 = arith.addi %0, %2 : vector<8x24xi32>
    %4 = arith.sitofp %3 : vector<8x24xi32> to vector<8x24xf32>
    %c0 = arith.constant 0 : index
    %c0_0 = arith.constant 0 : index
    %5 = vector.load %arg2[%c0, %c0_0] : memref<2x24xf32, #tpu.memory_space<vmem>>, vector<1x24xf32>
    %6 = vector.broadcast %5 : vector<1x24xf32> to vector<8x24xf32>
    %7 = arith.mulf %4, %6 : vector<8x24xf32>
    %c1 = arith.constant 1 : index
    %c0_1 = arith.constant 0 : index
    %8 = vector.load %arg2[%c1, %c0_1] : memref<2x24xf32, #tpu.memory_space<vmem>>, vector<1x24xf32>
    %9 = vector.broadcast %8 : vector<1x24xf32> to vector<8x24xf32>
    %10 = arith.addf %7, %9 : vector<8x24xf32>
    %11 = math.sin %10 : vector<8x24xf32>
    %c0_2 = arith.constant 0 : index
    %c0_3 = arith.constant 0 : index
    %12 = vector.load %arg1[%c0_2, %c0_3] : memref<8x24xf32, #tpu.memory_space<vmem>>, vector<8x24xf32>
    %13 = arith.addf %12, %11 : vector<8x24xf32>
    %c0_4 = arith.constant 0 : index
    %c0_5 = arith.constant 0 : index
    %14 = vector.load %arg3[%c0_4, %c0_5] : memref<8x24xf32, #tpu.memory_space<vmem>>, vector<8x24xf32>
    tpu.vector_store %arg3[%c0_4, %c0_5], %13 {strides = array<i32>} : memref<8x24xf32, #tpu.memory_space<vmem>>, vector<8x24xf32>,
    return
  }
  func.func @transform_0(%arg0: i32) -> (i32, i32) {
    %c0_i32 = arith.constant 0 : i32
    %c0_i32_0 = arith.constant 0 : i32
    return %arg0, %c0_i32 : i32, i32
  }
  func.func @transform_1(%arg0: i32) -> (i32, i32) {
    %c0_i32 = arith.constant 0 : i32
    %c0_i32_0 = arith.constant 0 : i32
    %c0_i32_1 = arith.constant 0 : i32
    return %c0_i32, %c0_i32_0 : i32, i32
  }
  func.func @transform_2(%arg0: i32) -> (i32, i32) {
    %c0_i32 = arith.constant 0 : i32
    %c0_i32_0 = arith.constant 0 : i32
    return %arg0, %c0_i32 : i32, i32
  }
}

</mosaic_0001>

<llo_original>
// kernel: tpu_custom_call.1
$region0: #{tpu_custom_call.1}
  #allocation0 [shape = 'u32[]', space=smem, size = 0x4, offset = 0x4, fixed_abs, tag = 'smem constant byte address 0x4 - core index']
  #allocation1 [shape = 'u32[144,128]{1,0:T(1,128)}', space=vmem, size = 0x12000, scoped, tag = 'internal scratch']
  %s0 = inlined_call_operand.hbm [shape: f32[8,24], index: 0, kind: input, shape index: {}]
  %s1 = inlined_call_operand.hbm [shape: f32[2,24], index: 1, kind: input, shape index: {}]
  %s2 = inlined_call_operand.hbm [shape: f32[8,24], index: 2, kind: output, shape index: {}]
  %s3 = sld [smem:[#allocation0]]
  $region26: #{tpu_custom_call.1} parent=0
    _
  %s5 = ssub.s32 1, %s3
  %s6 = scalar_select 0, %s5, %s3
  $region1: #{tpu_custom_call.1} parent=0
    #allocation2 [shape = 'u8[4096]{0}', space=vmem, size = 0x1000, scoped, tag = 'input window, operand 0, single buffered']
    #allocation3 [shape = 's32[1]{0}', space=sflag, size = 0x4, scoped, tag = 'scoped memory for tpu_custom_call.1']
    #allocation4 [shape = 's32[1]{0}', space=sflag, size = 0x4, scoped, tag = 'scoped memory for tpu_custom_call.1']
    #allocation5 [shape = 'u8[1024]{0}', space=vmem, size = 0x400, scoped, tag = 'input window, operand 1, single buffered']
    #allocation6 [shape = 's32[1]{0}', space=sflag, size = 0x4, scoped, tag = 'scoped memory for tpu_custom_call.1']
    #allocation7 [shape = 'u8[4096]{0}', space=vmem, size = 0x1000, scoped, tag = 'output window, operand 0, single buffered']
    %7 = vsyncpa [#allocation3], 0
    %8 = vsyncpa [#allocation6], 0
    %9 = vsyncpa [#allocation4], 0
    // Predicated region
    $region2: #{tpu_custom_call.1} parent=1 // pred_check
      _
    $region3: #{tpu_custom_call.1} parent=1 // pred_check_branch
      %11 = sbr.rel (0) target = $region5
    $region4: #{tpu_custom_call.1} parent=1 // pred_region
      %s13 = ssub.s32 128, 128
      %14 = vsyncadd [#allocation3], %s13
      %s16 = sshll.u32 [#allocation2], 4
      %s17 = int_to_ptr.vmem [resolvable:$true] %s16
      %19 = dma.hbm_to_vmem [thread:$0]  %s0, 128, %s17, [#allocation3]
    $region5: #{tpu_custom_call.1} parent=1 // pred_fallthru
      _
    // Predicated region
    $region6: #{tpu_custom_call.1} parent=1 // pred_check
      _
    $region7: #{tpu_custom_call.1} parent=1 // pred_check_branch
      %21 = sbr.rel (0) target = $region9
    $region8: #{tpu_custom_call.1} parent=1 // pred_region
      %s23 = ssub.s32 32, 32
      %24 = vsyncadd [#allocation6], %s23
      %s26 = sshll.u32 [#allocation5], 4
      %s27 = int_to_ptr.vmem [resolvable:$true] %s26
      %29 = dma.hbm_to_vmem [thread:$0]  %s1, 32, %s27, [#allocation6]
    $region9: #{tpu_custom_call.1} parent=1 // pred_fallthru
      _
    // Predicated region
    $region10: #{tpu_custom_call.1} parent=1 // pred_check
      _
    $region11: #{tpu_custom_call.1} parent=1 // pred_check_branch
      %31 = sbr.rel (0) target = $region13
    $region12: #{tpu_custom_call.1} parent=1 // pred_region
      %32 = dma.done [#allocation3], 128
    $region13: #{tpu_custom_call.1} parent=1 // pred_fallthru
      _
    // Predicated region
    $region14: #{tpu_custom_call.1} parent=1 // pred_check
      _
    $region15: #{tpu_custom_call.1} parent=1 // pred_check_branch
      %34 = sbr.rel (0) target = $region17
    $region16: #{tpu_custom_call.1} parent=1 // pred_region
      %35 = dma.done [#allocation6], 32
    $region17: #{tpu_custom_call.1} parent=1 // pred_fallthru
      _
    %v36 = vlaneseq
    %v37 = vshrl.u32 %v36, 7
    %s38 = smul.u32 0, 8
    %v39 = vstv %s38
    %v40 = vadd.s32 %v37, %v39
    %v41 = vcvt.s32.f32 %v40
    %v42 = vld [vmem:[#allocation5] sm:$0x1]
    %v43 = vlaneseq
    %v44 = vshrl.u32 %v43, 7
    %v45 = vsub.s32 0, %v44
    %v46 = vrot.slane %v42, %v45
    %v47 = vmul.f32 %v41, %v46
    %v48 = vld [vmem:[#allocation5 + $0x1] sm:$0x1]
    %v49 = vlaneseq
    %v50 = vshrl.u32 %v49, 7
    %v51 = vsub.s32 0, %v50
    %v52 = vrot.slane %v48, %v51
    %v53 = vadd.f32 %v47, %v52
    %v54 = vand.u32 2147483647, %v53
    %vm55 = vcmp.le.f32.partialorder %v54, 0.7853982
    %vm56 = vcmp.lt.s32.totalorder %v53, 0
    %v57 = vand.u32 %v53, 2139095040
    %v58 = vshrl.u32 %v57, 23
    %v59 = vsub.s32 %v58, 127
    %v60 = vand.u32 2147483647, %v53
    %v61 = vand.u32 %v60, 8388607
    %v62 = vor.u32 %v61, 8388608
    %v63 = vsub.s32 0, %v62
    %v64 = vadd.s32 %v59, 1
    %vm65 = vcmp.gt.s32.totalorder %v64, 0
    %v66 = vsel %vm65, %v64, 0
    %v67 = vshrl.u32 %v66, 5
    %v68 = vand.u32 %v66, 31
    %v69 = vsub.s32 32, %v68
    %v70 = vshrl.u32 683565275, %v69
    %v71 = vshll.u32 683565275, %v68
    %v72 = vshrl.u32 2475754826, %v69
    %v73 = vor.u32 %v71, %v72
    %v74 = vshll.u32 2475754826, %v68
    %v75 = vshrl.u32 2131351028, %v69
    %v76 = vor.u32 %v74, %v75
    %v77 = vshll.u32 2131351028, %v68
    %v78 = vshrl.u32 2102212464, %v69
    %v79 = vor.u32 %v77, %v78
    %v80 = vshll.u32 2102212464, %v68
    %v81 = vshrl.u32 920167782, %v69
    %v82 = vor.u32 %v80, %v81
    %v83 = vshll.u32 920167782, %v68
    %v84 = vshrl.u32 1326507024, %v69
    %v85 = vor.u32 %v83, %v84
    %vm86 = vcmp.lt.s32.totalorder %v67, 1
    %vm87 = vcmp.lt.s32.totalorder %v67, 2
    %vm88 = vcmp.lt.s32.totalorder %v67, 3
    %vm89 = vcmp.lt.s32.totalorder %v67, 4
    %v90 = vsel %vm86, %v70, %v73
    %v91 = vsel %vm89, %v79, 2102212464
    %v92 = vsel %vm88, %v76, %v91
    %v93 = vsel %vm87, %v90, %v92
    %v94 = vsel %vm86, %v73, %v76
    %v95 = vsel %vm89, %v82, 920167782
    %v96 = vsel %vm88, %v79, %v95
    %v97 = vsel %vm87, %v94, %v96
    %v98 = vsel %vm86, %v76, %v79
    %v99 = vsel %vm89, %v85, 1326507024
    %v100 = vsel %vm88, %v82, %v99
    %v101 = vsel %vm87, %v98, %v100
    %v102 = vshll.u32 %v62, 8
    %v103 = vmul.u32.u64.compose %v102, %v101
    %v104 = vextract.low.u32 %v103
    %v105 = vextract.high.u32 %v103
    %v106 = vmul.u32.u64.compose %v102, %v97
    %v107 = vextract.low.u32 %v106
    %v108 = vextract.high.u32 %v106
    %v109 = vmul.u32 %v102, %v93
    %v110 = vadd.s32 %v105, %v107
    %vm111 = vc.u32 %v105, %v107
    %v112 = vadd.s32 %v108, 1
    %v113 = vsel %vm111, %v112, %v108
    %v114 = vadd.s32 %v109, %v113
    %v115 = vadd.s32 %v114, 536870912
    %v116 = vshrl.u32 %v115, 30
    %v117 = vshll.u32 %v116, 30
    %v118 = vsub.s32 %v114, %v117
    %vm119 = vcmp.lt.s32.totalorder %v118, 0
    %v120 = vsub.s32 0, %v118
    %v121 = vsel %vm119, %v120, %v118
    %v122 = vclz %v121
    %v123 = vsub.s32 %v122, 2
    %vm124 = vcmp.gt.s32.totalorder 0, %v123
    %v125 = vsel %vm124, 0, %v123
    %v126 = vsub.s32 32, %v125
    %v127 = vshll.u32 %v118, %v125
    %v128 = vshrl.u32 %v110, %v126
    %v129 = vor.u32 %v127, %v128
    %v130 = vsub.s32 4294967266, %v125
    %v131 = vadd.s32 %v130, 127
    %v132 = vshll.u32 %v131, 23
    %v133 = vor.u32 4788187, %v132
    %v134 = vand.u32 2147483647, %v133
    %v136 = vcvt.s32.f32 %v129
    %v137 = vmul.f32 %v136, %v134
    %v138 = vxor.u32 %v137, 2147483648
    %v139 = vsel %vm56, %v138, %v137
    %v140 = vsub.s32 4, %v116
    %v141 = vsel %vm56, %v140, %v116
    %v142 = vsel %vm55, %v53, %v139
    %v143 = vsel %vm55, 0, %v141
    %v144 = vcosq.f32.pop %v142
    %v145 = vsinq.f32.pop %v142
    %vm146 = vweird.f32 %v53
    %v147 = vadd.s32 %v143, 3
    %v148 = vand.u32 %v147, 3
    %vm149 = vcmp.lt.s32.totalorder %v148, 2
    %vm150 = vcmp.eq.s32.totalorder %v148, 0
    %v151 = vxor.u32 %v145, 2147483648
    %v152 = vsel %vm150, %v144, %v151
    %vm153 = vcmp.eq.s32.totalorder %v148, 2
    %v154 = vxor.u32 %v144, 2147483648
    %v155 = vsel %vm153, %v154, %v145
    %v156 = vsel %vm149, %v152, %v155
    %v157 = vsel %vm146, nan, %v156
    %v158 = vld [vmem:[#allocation2] sm:$0xff]
    %v159 = vadd.f32 %v158, %v157
    %vm160 = vcmask 195584
    %161 = vst.msk [vmem:[#allocation7] sm:$0xff] %vm160, %v159
    // Predicated region
    $region18: #{tpu_custom_call.1} parent=1 // pred_check
      _
    $region19: #{tpu_custom_call.1} parent=1 // pred_check_branch
      %163 = sbr.rel (0) target = $region21
    $region20: #{tpu_custom_call.1} parent=1 // pred_region
      %s165 = ssub.s32 128, 128
      %166 = vsyncadd [#allocation4], %s165
      %s168 = sshll.u32 [#allocation7], 4
      %s169 = int_to_ptr.vmem [resolvable:$true] %s168
      %171 = dma.vmem_to_hbm [thread:$0]  %s169, 128, %s2, [#allocation4]
    $region21: #{tpu_custom_call.1} parent=1 // pred_fallthru
      _
    // Predicated region
    $region22: #{tpu_custom_call.1} parent=1 // pred_check
      _
    $region23: #{tpu_custom_call.1} parent=1 // pred_check_branch
      %173 = sbr.rel (0) target = $region25
    $region24: #{tpu_custom_call.1} parent=1 // pred_region
      %174 = dma.done [#allocation4], 128
    $region25: #{tpu_custom_call.1} parent=1 // pred_fallthru
      _
    %175 = vsyncpa [#allocation3], 1
    %176 = vsyncpa [#allocation6], 1
    %177 = vsyncpa [#allocation4], 1

</llo_original>
